<compile_context>
chip_gen: v7x
topology: tpu7x:2x2x1
jax: 0.10.0
libtpu: 0.0.40
codegen_flags: <defaults>
</compile_context>

<pallas_src>
import functools

import jax
import jax.numpy as jnp
from jax.experimental import pallas as pl
from jax.experimental.pallas import tpu as pltpu

RMS_EPS = 1e-6
HIDDEN = 32
BATCH = 2
SEQ = 8

# VMEM sizing: safe on every generation (v7x: 64 MiB physical, 32 MiB scoped default;
# v5e: 128 MiB physical, 16 MiB scoped default). Tile budget leaves headroom under the
# scoped limit for the f32 in-register temporaries and the (1, H) weight buffers.
VMEM_LIMIT_BYTES = 48 * 1024 * 1024
TILE_BUDGET_BYTES = 40 * 1024 * 1024
MAX_TILE_ROWS = 1024  # measured 512-1024 row tiles sit at ~85% of HBM roofline


def _rmsnorm_kernel(x_ref, w_ref, o_ref, *, eps, fold, h):
    """x_ref: (tm, fold*h) activation tile; w_ref: (1, fold*h) gamma (tiled if fold>1)."""
    x = x_ref[...].astype(jnp.float32)
    if fold == 1:
        var = jnp.mean(x * x, axis=-1, keepdims=True)
        y = x * jax.lax.rsqrt(var + eps)                      # rsqrt -> EUP slot
    else:
        # Lane-dense path: each group of `h` lanes is one logical row; segmented mean.
        tm = x.shape[0]
        xr = x.reshape(tm, fold, h)
        var = jnp.mean(xr * xr, axis=-1, keepdims=True)
        y = (xr * jax.lax.rsqrt(var + eps)).reshape(tm, fold * h)
    # HF LlamaRMSNorm casts the normalized value to the input dtype BEFORE the weight
    # multiply; the multiply then promotes to the weight dtype if they differ.
    o_ref[...] = (w_ref[...] * y.astype(x_ref.dtype)).astype(o_ref.dtype)


def llama_rmsnorm(hidden_states, weight, eps=RMS_EPS):
    """RMSNorm over the last axis of `hidden_states`; weight shape (H,)."""
    orig_shape = hidden_states.shape
    H = orig_shape[-1]
    x2d = hidden_states.reshape(-1, H)
    M = x2d.shape[0]

    # HF returns weight * hidden.to(input_dtype) -> torch type promotion.
    out_dtype = jnp.promote_types(hidden_states.dtype, weight.dtype)

    # ---- Lane-dense folding for narrow hidden sizes (H < 128) ----------------------
    fold = 1
    if H < 128 and 128 % H == 0 and M % (128 // H) == 0:
        fold = 128 // H
    H_eff = fold * H
    M_eff = M // fold
    x_eff = x2d.reshape(M_eff, H_eff)
    w2d = weight.reshape(1, H)
    w_eff = jnp.tile(w2d, (1, fold)) if fold > 1 else w2d

    # ---- Row-tile sizing against the per-generation VMEM budget --------------------
    itemsize = jnp.dtype(hidden_states.dtype).itemsize
    # 2x double-buffered input + 2x double-buffered output + ~one f32 temp per element.
    bytes_per_row = H_eff * (4 * itemsize + 4)
    tm_budget = max(8, min(MAX_TILE_ROWS, (TILE_BUDGET_BYTES // bytes_per_row) // 8 * 8))

    if M_eff <= tm_budget:
        if M_eff >= 16:
            # Split into >= 2 grid steps so v7x's second TensorCore gets work.
            tm = min(tm_budget, ((pl.cdiv(M_eff, 2) + 7) // 8) * 8)
        else:
            tm = M_eff  # single full-extent block (allowed even if not 8-aligned)
    else:
        tm = tm_budget

    grid = (pl.cdiv(M_eff, tm),)

    out_eff = pl.pallas_call(
        functools.partial(_rmsnorm_kernel, eps=eps, fold=fold, h=H),
        out_shape=jax.ShapeDtypeStruct((M_eff, H_eff), out_dtype),
        grid=grid,
        in_specs=[
            pl.BlockSpec((tm, H_eff), lambda i: (i, 0)),   # activation row tile
            pl.BlockSpec((1, H_eff), lambda i: (0, 0)),    # gamma, broadcast over grid
        ],
        out_specs=pl.BlockSpec((tm, H_eff), lambda i: (i, 0)),
        compiler_params=pltpu.CompilerParams(
            # Row axis is independent -> shard across TensorCores on v7x.
            dimension_semantics=("parallel",),
            vmem_limit_bytes=VMEM_LIMIT_BYTES,
        ),
    )(x_eff, w_eff)

    return out_eff.reshape(orig_shape)


if __name__ == "__main__":
    key = jax.random.PRNGKey(0)
    xkey, _ = jax.random.split(key)

    hidden_states = jax.random.normal(xkey, (BATCH, SEQ, HIDDEN), jnp.float32)
    weight = jnp.ones((HIDDEN,), jnp.float32)

    out = jax.jit(llama_rmsnorm)(hidden_states, weight)
    out = jax.block_until_ready(out)

    # Pure-JAX reference (HF semantics) for a correctness sanity check.
    x32 = hidden_states.astype(jnp.float32)
    var = jnp.mean(x32 * x32, axis=-1, keepdims=True)
    ref = weight * (x32 * jax.lax.rsqrt(var + RMS_EPS)).astype(hidden_states.dtype)

    assert out.shape == hidden_states.shape
    assert out.dtype == ref.dtype
    assert jnp.allclose(out, ref, atol=1e-6, rtol=1e-6)
    print("KERNEL_OK")
</pallas_src>

<mosaic_0001>
module attributes {stable_mosaic.version = 11 : i64} {
  func.func @_rmsnorm_kernel(%arg0: i32, %arg1: memref<4x128xf32, #tpu.memory_space<vmem>>, %arg2: memref<1x128xf32, #tpu.memory_space<vmem>>, %arg3: memref<4x128xf32, #tpu.memory_space<vmem>>) attributes {dimension_semantics = [#tpu.dimension_semantics<parallel>], iteration_bounds = array<i64: 1>, scalar_prefetch = 0 : i64, scratch_operands = 0 : i64, tpu.core_type = #tpu.core_type<tc>, window_params = [{transform_indices = @transform_0, window_bounds = array<i64: 4, 128>}, {pipeline_mode = #tpu.pipeline_mode<synchronous>, transform_indices = @transform_1, window_bounds = array<i64: 1, 128>}, {transform_indices = @transform_2, window_bounds = array<i64: 4, 128>}]} {
    %c0 = arith.constant 0 : index
    %c0_0 = arith.constant 0 : index
    %0 = vector.load %arg1[%c0, %c0_0] : memref<4x128xf32, #tpu.memory_space<vmem>>, vector<4x128xf32>
    %1 = vector.shape_cast %0 : vector<4x128xf32> to vector<4x4x32xf32>
    %2 = arith.mulf %1, %1 : vector<4x4x32xf32>
    %cst = arith.constant dense<0.000000e+00> : vector<4x4xf32>
    %3 = vector.multi_reduction <add>, %2, %cst [2] : vector<4x4x32xf32> to vector<4x4xf32>
    %4 = vector.shape_cast %3 : vector<4x4xf32> to vector<4x4x1xf32>
    %cst_1 = arith.constant 3.200000e+01 : f32
    %5 = vector.broadcast %cst_1 : f32 to vector<4x4x1xf32>
    %6 = arith.divf %4, %5 : vector<4x4x1xf32>
    %cst_2 = arith.constant 9.99999997E-7 : f32
    %7 = vector.broadcast %cst_2 : f32 to vector<4x4x1xf32>
    %8 = arith.addf %6, %7 : vector<4x4x1xf32>
    %9 = math.rsqrt %8 : vector<4x4x1xf32>
    %10 = vector.broadcast %9 : vector<4x4x1xf32> to vector<4x4x32xf32>
    %11 = arith.mulf %1, %10 : vector<4x4x32xf32>
    %12 = vector.shape_cast %11 : vector<4x4x32xf32> to vector<4x128xf32>
    %c0_3 = arith.constant 0 : index
    %c0_4 = arith.constant 0 : index
    %13 = vector.load %arg2[%c0_3, %c0_4] : memref<1x128xf32, #tpu.memory_space<vmem>>, vector<1x128xf32>
    %14 = vector.broadcast %13 : vector<1x128xf32> to vector<4x128xf32>
    %15 = arith.mulf %14, %12 : vector<4x128xf32>
    %c0_5 = arith.constant 0 : index
    %c0_6 = arith.constant 0 : index
    %16 = vector.load %arg3[%c0_5, %c0_6] : memref<4x128xf32, #tpu.memory_space<vmem>>, vector<4x128xf32>
    tpu.vector_store %arg3[%c0_5, %c0_6], %15 {strides = array<i32>} : memref<4x128xf32, #tpu.memory_space<vmem>>, vector<4x128xf32>,
    return
  }
  func.func @transform_0(%arg0: i32) -> (i32, i32) {
    %c0_i32 = arith.constant 0 : i32
    %c0_i32_0 = arith.constant 0 : i32
    return %arg0, %c0_i32 : i32, i32
  }
  func.func @transform_1(%arg0: i32) -> (i32, i32) {
    %c0_i32 = arith.constant 0 : i32
    %c0_i32_0 = arith.constant 0 : i32
    %c0_i32_1 = arith.constant 0 : i32
    return %c0_i32, %c0_i32_0 : i32, i32
  }
  func.func @transform_2(%arg0: i32) -> (i32, i32) {
    %c0_i32 = arith.constant 0 : i32
    %c0_i32_0 = arith.constant 0 : i32
    return %arg0, %c0_i32 : i32, i32
  }
}

</mosaic_0001>

<llo_original>
// kernel: llama_rmsnorm.1
$region0: #{llama_rmsnorm.1}
  #allocation0 [shape = 'u32[]', space=smem, size = 0x4, offset = 0x4, fixed_abs, tag = 'smem constant byte address 0x4 - core index']
  #allocation1 [shape = 'u32[144,128]{1,0:T(1,128)}', space=vmem, size = 0x12000, scoped, tag = 'internal scratch']
  %s0 = inlined_call_operand.vmem [shape: f32[4,128], index: 0, kind: input, shape index: {}]
  %s1 = inlined_call_operand.vmem [shape: f32[1,128], index: 1, kind: input, shape index: {}]
  %s2 = inlined_call_operand.vmem [shape: f32[4,128], index: 2, kind: output, shape index: {}]
  %s3 = sld [smem:[#allocation0]]
  $region18: #{llama_rmsnorm.1} parent=0
    _
  %s5 = ssub.s32 1, %s3
  %s6 = scalar_select 0, %s5, %s3
  // Predicated region
  $region2: #{llama_rmsnorm.1} parent=0 // pred_check
    _
  $region3: #{llama_rmsnorm.1} parent=0 // pred_check_branch
    %8 = sbr.rel (0) target = $region5
  $region4: #{llama_rmsnorm.1} parent=0 // pred_region
    _
  $region5: #{llama_rmsnorm.1} parent=0 // pred_fallthru
    _
  // Predicated region
  $region6: #{llama_rmsnorm.1} parent=0 // pred_check
    _
  $region7: #{llama_rmsnorm.1} parent=0 // pred_check_branch
    %10 = sbr.rel (0) target = $region9
  $region8: #{llama_rmsnorm.1} parent=0 // pred_region
    _
  $region9: #{llama_rmsnorm.1} parent=0 // pred_fallthru
    _
  %v11 = vld [vmem:[%s0] sm:$0xf]
  %13 = vrot.lane.b32.xlu0 %v11, 96
  %v14 = vpop.permute.xlu0 %13
  %16 = vrot.lane.b32.xlu0 %v11, 64
  %v17 = vpop.permute.xlu0 %16
  %19 = vrot.lane.b32.xlu0 %v11, 32
  %v20 = vpop.permute.xlu0 %19
  %v22 = vcombine.low %v11, %v17
  %v24 = vunpack.c.l.s4 1983009808
  %v25 = vunpack.c.0.s8 %v24
  %v26 = vlaneseq
  %v27 = vshrl.u32 %v26, 7
  %v28 = vsub.s32 %v25, %v27
  %v29 = vrot.slane %v22, %v28
  %v30 = vcombine.low %v14, %v20
  %v32 = vunpack.c.l.s4 1983009808
  %v33 = vunpack.c.0.s8 %v32
  %v34 = vlaneseq
  %v35 = vshrl.u32 %v34, 7
  %v36 = vsub.s32 %v33, %v35
  %v37 = vrot.slane %v30, %v36
  %v38 = vcombine.low %v29, %v37
  %v39 = vcombine.high %v29, %v37
  %v41 = vunpack.c.l.s4 1934713408
  %v42 = vunpack.c.0.s8 %v41
  %v43 = vlaneseq
  %v44 = vshrl.u32 %v43, 7
  %v45 = vsub.s32 %v42, %v44
  %v46 = vrot.slane %v38, %v45
  %v48 = vunpack.c.l.s4 1934713408
  %v49 = vunpack.c.0.s8 %v48
  %v50 = vlaneseq
  %v51 = vshrl.u32 %v50, 7
  %v52 = vsub.s32 %v49, %v51
  %v53 = vrot.slane %v39, %v52
  %v54 = vcombine.high %v46, 0.0
  %v55 = vcombine.high %v53, 0.0
  %v56 = vmul.f32 %v46, %v46
  %v57 = vmul.f32 %v54, %v54
  %v58 = vmul.f32 %v53, %v53
  %v59 = vmul.f32 %v55, %v55
  %vm60 = vcmask 257024
  %v61 = vsel %vm60, %v56, 0.0
  %62 = vadd.xlane.f32.xlu0 %v61
  %v63 = vpop.xlane.xlu0 %62
  %v64 = vsel %vm60, %v57, 0.0
  %65 = vadd.xlane.f32.xlu0 %v64
  %v66 = vpop.xlane.xlu0 %65
  %v67 = vsel %vm60, %v58, 0.0
  %68 = vadd.xlane.f32.xlu0 %v67
  %v69 = vpop.xlane.xlu0 %68
  %v70 = vsel %vm60, %v59, 0.0
  %71 = vadd.xlane.f32.xlu0 %v70
  %v72 = vpop.xlane.xlu0 %71
  %v73 = vrcp.pop 32.0
  %v74 = vmul.f32 %v63, %v73
  %v75 = vmul.f32 %v66, %v73
  %v76 = vmul.f32 %v69, %v73
  %v77 = vmul.f32 %v72, %v73
  %v78 = vadd.f32 %v74, 1e-06
  %v79 = vadd.f32 %v75, 1e-06
  %v80 = vadd.f32 %v76, 1e-06
  %v81 = vadd.f32 %v77, 1e-06
  %v82 = vrsqrt.pop %v78
  %v83 = vrsqrt.pop %v79
  %v84 = vrsqrt.pop %v80
  %v85 = vrsqrt.pop %v81
  %v86 = vmul.f32 %v46, %v82
  %v87 = vmul.f32 %v54, %v83
  %v88 = vmul.f32 %v53, %v84
  %v89 = vmul.f32 %v55, %v85
  %v90 = vcombine.low %v86, %v88
  %v92 = vunpack.c.l.s4 1983009808
  %v93 = vunpack.c.0.s8 %v92
  %v94 = vlaneseq
  %v95 = vshrl.u32 %v94, 7
  %v96 = vsub.s32 %v93, %v95
  %v97 = vrot.slane %v90, %v96
  %v98 = vcombine.low %v87, %v89
  %v100 = vunpack.c.l.s4 1983009808
  %v101 = vunpack.c.0.s8 %v100
  %v102 = vlaneseq
  %v103 = vshrl.u32 %v102, 7
  %v104 = vsub.s32 %v101, %v103
  %v105 = vrot.slane %v98, %v104
  %v106 = vcombine.low %v97, %v105
  %v107 = vcombine.high %v97, %v105
  %v109 = vunpack.c.l.s4 1934713408
  %v110 = vunpack.c.0.s8 %v109
  %v111 = vlaneseq
  %v112 = vshrl.u32 %v111, 7
  %v113 = vsub.s32 %v110, %v112
  %v114 = vrot.slane %v106, %v113
  %v116 = vunpack.c.l.s4 1934713408
  %v117 = vunpack.c.0.s8 %v116
  %v118 = vlaneseq
  %v119 = vshrl.u32 %v118, 7
  %v120 = vsub.s32 %v117, %v119
  %v121 = vrot.slane %v107, %v120
  %v122 = vcombine.high %v114, 0.0
  %v123 = vcombine.high %v121, 0.0
  %125 = vrot.lane.b32.xlu0 %v122, 32
  %v126 = vpop.permute.xlu0 %125
  %129 = vrot.lane.b32.xlu0 %v121, 64
  %v130 = vpop.permute.xlu0 %129
  %133 = vrot.lane.b32.xlu0 %v123, 96
  %v134 = vpop.permute.xlu0 %133
  %vm136 = vcmask 261120
  %v137 = vsel %vm136, %v114, %v126
  %vm138 = vcmask 523264
  %v139 = vsel %vm138, %v137, %v130
  %vm140 = vcmask 785408
  %v141 = vsel %vm140, %v139, %v134
  %v142 = vld [vmem:[%s1] sm:$0x1]
  %v144 = vlaneseq
  %v145 = vshrl.u32 %v144, 7
  %v146 = vsub.s32 0, %v145
  %v147 = vrot.slane %v142, %v146
  %v149 = vmul.f32 %v147, %v141
  %150 = vst [vmem:[%s2] sm:$0xf] %v149
  // Predicated region
  $region10: #{llama_rmsnorm.1} parent=0 // pred_check
    _
  $region11: #{llama_rmsnorm.1} parent=0 // pred_check_branch
    %152 = sbr.rel (0) target = $region13
  $region12: #{llama_rmsnorm.1} parent=0 // pred_region
    _
  $region13: #{llama_rmsnorm.1} parent=0 // pred_fallthru
    _
  // Predicated region
  $region14: #{llama_rmsnorm.1} parent=0 // pred_check
    _
  $region15: #{llama_rmsnorm.1} parent=0 // pred_check_branch
    %154 = sbr.rel (0) target = $region17
  $region16: #{llama_rmsnorm.1} parent=0 // pred_region
    _
  $region17: #{llama_rmsnorm.1} parent=0 // pred_fallthru
    _

</llo_original>
